<compile_context>
chip_gen: v7x
topology: tpu7x:2x2x1
jax: 0.10.0
libtpu: 0.0.40
codegen_flags: <defaults>
</compile_context>

<pallas_src>
import jax
import jax.numpy as jnp
from jax.experimental import pallas as pl
from jax.experimental.pallas import tpu as pltpu


def _round_up(x, m):
    return (x + m - 1) // m * m


def _pose_kernel(x_ref, w1_ref, b1_ref, w2_ref, b2_ref, o_ref, h_ref):
    # x_ref : (tm, in_size)        bf16   (resident per batch tile)
    # w1_ref: (in_size, hidden)    bf16   (resident)
    # b1_ref: (1, hidden)          f32    (resident)
    # w2_ref: (hidden, tn)         bf16   (streamed per j)
    # b2_ref: (1, tn)              f32    (streamed per j)
    # o_ref : (tm, tn)             f32
    # h_ref : (tm, hidden)         f32 VMEM scratch (layer-1 activations)

    # Layer 1: compute once per batch tile (first column step only).
    @pl.when(pl.program_id(1) == 0)
    def _():
        h = jnp.dot(x_ref[...], w1_ref[...], preferred_element_type=jnp.float32)
        h_ref[...] = jnp.tanh(h + b1_ref[...])

    # Layer 2: one lane-dense column tile of W2 per grid step.
    z = jnp.dot(h_ref[...].astype(w2_ref.dtype), w2_ref[...],
                preferred_element_type=jnp.float32) + b2_ref[...]
    o_ref[...] = jnp.tanh(z).astype(o_ref.dtype)


def _pick_tn(hidden):
    """Lane-dense column tile: multiple of 128 dividing hidden, else full dim."""
    if hidden % 128 != 0:
        return hidden
    for cand in (512, 384, 256, 128):
        if cand <= hidden and hidden % cand == 0:
            return cand
    return hidden


def pose_network_forward(delta_theta, params, channel, height, width):
    """delta_theta: (B, input_size) f32 -> z_theta: (B, C, H, W) f32."""
    w1, b1, w2, b2 = params
    batch, in_size = delta_theta.shape
    hidden = channel * height * width
    assert w1.shape == (in_size, hidden) and w2.shape == (hidden, hidden)

    # Weights in bf16 (HBM-traffic win); biases stay f32 (added to f32 acc).
    w1_b = w1.astype(jnp.bfloat16)
    w2_b = w2.astype(jnp.bfloat16)
    b1_f = b1.astype(jnp.float32).reshape(1, hidden)
    b2_f = b2.astype(jnp.float32).reshape(1, hidden)

    # Batch tiling: pad to the sublane quantum (8), tile at <= 128 rows.
    tm = min(128, _round_up(batch, 8))
    m_pad = _round_up(batch, tm)
    x = delta_theta.astype(jnp.bfloat16)
    if m_pad != batch:
        x = jnp.pad(x, ((0, m_pad - batch), (0, 0)))

    # Layer-2 output-column tiling.
    tn = _pick_tn(hidden)
    grid = (m_pad // tm, hidden // tn)

    # Explicit VMEM budget: ~2 buffers per pipelined array + resident scratch.
    blk_bytes = (tm * in_size * 2 + in_size * hidden * 2 + hidden * 4   # x, w1, b1
                 + hidden * tn * 2 + tn * 4                             # w2, b2 tiles
                 + tm * tn * 4)                                         # out tile
    scratch_bytes = tm * hidden * 4
    vmem_limit = int(min(max(2 * blk_bytes + scratch_bytes + (4 << 20), 8 << 20),
                         60 << 20))  # stay under v7x's 64 MiB physical VMEM

    out_flat = pl.pallas_call(
        _pose_kernel,
        out_shape=jax.ShapeDtypeStruct((m_pad, hidden), jnp.float32),
        grid_spec=pltpu.PrefetchScalarGridSpec(
            num_scalar_prefetch=0,
            grid=grid,
            in_specs=[
                pl.BlockSpec((tm, in_size), lambda i, j: (i, 0)),       # x   (per batch tile)
                pl.BlockSpec((in_size, hidden), lambda i, j: (0, 0)),   # w1  (resident)
                pl.BlockSpec((1, hidden), lambda i, j: (0, 0)),         # b1  (resident)
                pl.BlockSpec((hidden, tn), lambda i, j: (0, j),         # w2  (streamed)
                             pipeline_mode=pl.Buffered(2)),
                pl.BlockSpec((1, tn), lambda i, j: (0, j)),             # b2  (streamed)
            ],
            out_specs=pl.BlockSpec((tm, tn), lambda i, j: (i, j)),
            scratch_shapes=[pltpu.VMEM((tm, hidden), jnp.float32)],
        ),
        compiler_params=pltpu.CompilerParams(
            dimension_semantics=("parallel", "arbitrary"),
            vmem_limit_bytes=vmem_limit,
        ),
    )(x, w1_b, b1_f, w2_b, b2_f)

    # Drop batch padding; view(-1, C, H, W) — row-major, same as PyTorch .view.
    return out_flat[:batch].reshape(-1, channel, height, width)


def init_params(key, input_size, hidden):
    """Deterministic init mirroring nn.Linear (weights stored transposed)."""
    k1, k2, k3, k4 = jax.random.split(key, 4)
    bound1 = 1.0 / (input_size ** 0.5)
    bound2 = 1.0 / (hidden ** 0.5)
    w1 = jax.random.uniform(k1, (input_size, hidden), jnp.float32, -bound1, bound1)
    b1 = jax.random.uniform(k2, (1, hidden), jnp.float32, -bound1, bound1)
    w2 = jax.random.uniform(k3, (hidden, hidden), jnp.float32, -bound2, bound2)
    b2 = jax.random.uniform(k4, (1, hidden), jnp.float32, -bound2, bound2)
    return w1, b1, w2, b2


if __name__ == "__main__":
    # Small shapes consistent with the module's forward:
    #   hidden = channel * height * width = 4 * 4 * 8 = 128
    batch, channel, height, width, input_size = 2, 4, 4, 8, 32
    hidden = channel * height * width

    key = jax.random.PRNGKey(0)
    k_x, k_p = jax.random.split(key)
    delta_theta = jax.random.normal(k_x, (batch, input_size), jnp.float32)
    params = init_params(k_p, input_size, hidden)

    z_theta = pose_network_forward(delta_theta, params, channel, height, width)
    z_theta = jax.block_until_ready(z_theta)

    # Reference: same math in plain JAX with the same bf16-weight / f32-acc
    # mixed precision used inside the kernel.
    w1, b1, w2, b2 = params
    xb = delta_theta.astype(jnp.bfloat16)
    w1b = w1.astype(jnp.bfloat16)
    w2b = w2.astype(jnp.bfloat16)
    h = jnp.tanh(jnp.dot(xb, w1b, preferred_element_type=jnp.float32) + b1)
    ref = jnp.tanh(jnp.dot(h.astype(jnp.bfloat16), w2b,
                           preferred_element_type=jnp.float32) + b2)
    ref = ref.reshape(-1, channel, height, width)

    assert z_theta.shape == (batch, channel, height, width)
    assert jnp.allclose(z_theta, ref, atol=2e-3, rtol=2e-3)

    print("KERNEL_OK")
</pallas_src>

<mosaic_0001>
module attributes {stable_mosaic.version = 11 : i64} {
  func.func @_pose_kernel(%arg0: i32, %arg1: i32, %arg2: memref<8x32xbf16, #tpu.memory_space<vmem>>, %arg3: memref<32x128xbf16, #tpu.memory_space<vmem>>, %arg4: memref<1x128xf32, #tpu.memory_space<vmem>>, %arg5: memref<128x128xbf16, #tpu.memory_space<vmem>>, %arg6: memref<1x128xf32, #tpu.memory_space<vmem>>, %arg7: memref<8x128xf32, #tpu.memory_space<vmem>>, %arg8: memref<8x128xf32, #tpu.memory_space<vmem>>) attributes {dimension_semantics = [#tpu.dimension_semantics<parallel>, #tpu.dimension_semantics<arbitrary>], iteration_bounds = array<i64: 1, 1>, scalar_prefetch = 0 : i64, scratch_operands = 1 : i64, tpu.core_type = #tpu.core_type<tc>, window_params = [{transform_indices = @transform_0, window_bounds = array<i64: 8, 32>}, {pipeline_mode = #tpu.pipeline_mode<synchronous>, transform_indices = @transform_1, window_bounds = array<i64: 32, 128>}, {pipeline_mode = #tpu.pipeline_mode<synchronous>, transform_indices = @transform_2, window_bounds = array<i64: 1, 128>}, {pipeline_mode = #tpu.pipeline_mode<double_buffered>, transform_indices = @transform_3, window_bounds = array<i64: 128, 128>}, {transform_indices = @transform_4, window_bounds = array<i64: 1, 128>}, {transform_indices = @transform_5, window_bounds = array<i64: 8, 128>}]} {
    %c0_i32 = arith.constant 0 : i32
    %0 = arith.cmpi eq, %arg1, %c0_i32 : i32
    %1 = arith.extui %0 : i1 to i32
    %c0_i32_0 = arith.constant 0 : i32
    %2 = arith.cmpi ne, %1, %c0_i32_0 : i32
    scf.if %2 {
      %c0_8 = arith.constant 0 : index
      %c0_9 = arith.constant 0 : index
      %12 = vector.load %arg2[%c0_8, %c0_9] : memref<8x32xbf16, #tpu.memory_space<vmem>>, vector<8x32xbf16>
      %c0_10 = arith.constant 0 : index
      %c0_11 = arith.constant 0 : index
      %13 = vector.load %arg3[%c0_10, %c0_11] : memref<32x128xbf16, #tpu.memory_space<vmem>>, vector<32x128xbf16>
      %cst_12 = arith.constant dense<0.000000e+00> : vector<8x128xf32>
      %14 = tpu.matmul %12, %13, %cst_12 {dimension_numbers = #tpu.dot_dimension_numbers<[1], [0], [0], [1], [0, 0, 1, 1], [], []>} : vector<8x32xbf16>, vector<32x128xbf16>, vector<8x128xf32> -> vector<8x128xf32>
      %c0_13 = arith.constant 0 : index
      %c0_14 = arith.constant 0 : index
      %15 = vector.load %arg4[%c0_13, %c0_14] : memref<1x128xf32, #tpu.memory_space<vmem>>, vector<1x128xf32>
      %16 = vector.broadcast %15 : vector<1x128xf32> to vector<8x128xf32>
      %17 = arith.addf %14, %16 : vector<8x128xf32>
      %18 = math.tanh %17 : vector<8x128xf32>
      %c0_15 = arith.constant 0 : index
      %c0_16 = arith.constant 0 : index
      %19 = vector.load %arg8[%c0_15, %c0_16] : memref<8x128xf32, #tpu.memory_space<vmem>>, vector<8x128xf32>
      tpu.vector_store %arg8[%c0_15, %c0_16], %18 {strides = array<i32>} : memref<8x128xf32, #tpu.memory_space<vmem>>, vector<8x128xf32>,
    } else {
    }
    %c0 = arith.constant 0 : index
    %c0_1 = arith.constant 0 : index
    %3 = vector.load %arg8[%c0, %c0_1] : memref<8x128xf32, #tpu.memory_space<vmem>>, vector<8x128xf32>
    %4 = arith.truncf %3 : vector<8x128xf32> to vector<8x128xbf16>
    %c0_2 = arith.constant 0 : index
    %c0_3 = arith.constant 0 : index
    %5 = vector.load %arg5[%c0_2, %c0_3] : memref<128x128xbf16, #tpu.memory_space<vmem>>, vector<128x128xbf16>
    %cst = arith.constant dense<0.000000e+00> : vector<8x128xf32>
    %6 = tpu.matmul %4, %5, %cst {dimension_numbers = #tpu.dot_dimension_numbers<[1], [0], [0], [1], [0, 0, 1, 1], [], []>} : vector<8x128xbf16>, vector<128x128xbf16>, vector<8x128xf32> -> vector<8x128xf32>
    %c0_4 = arith.constant 0 : index
    %c0_5 = arith.constant 0 : index
    %7 = vector.load %arg6[%c0_4, %c0_5] : memref<1x128xf32, #tpu.memory_space<vmem>>, vector<1x128xf32>
    %8 = vector.broadcast %7 : vector<1x128xf32> to vector<8x128xf32>
    %9 = arith.addf %6, %8 : vector<8x128xf32>
    %10 = math.tanh %9 : vector<8x128xf32>
    %c0_6 = arith.constant 0 : index
    %c0_7 = arith.constant 0 : index
    %11 = vector.load %arg7[%c0_6, %c0_7] : memref<8x128xf32, #tpu.memory_space<vmem>>, vector<8x128xf32>
    tpu.vector_store %arg7[%c0_6, %c0_7], %10 {strides = array<i32>} : memref<8x128xf32, #tpu.memory_space<vmem>>, vector<8x128xf32>,
    return
  }
  func.func @transform_0(%arg0: i32, %arg1: i32) -> (i32, i32) {
    %c0_i32 = arith.constant 0 : i32
    %c0_i32_0 = arith.constant 0 : i32
    return %arg0, %c0_i32 : i32, i32
  }
  func.func @transform_1(%arg0: i32, %arg1: i32) -> (i32, i32) {
    %c0_i32 = arith.constant 0 : i32
    %c0_i32_0 = arith.constant 0 : i32
    %c0_i32_1 = arith.constant 0 : i32
    return %c0_i32, %c0_i32_0 : i32, i32
  }
  func.func @transform_2(%arg0: i32, %arg1: i32) -> (i32, i32) {
    %c0_i32 = arith.constant 0 : i32
    %c0_i32_0 = arith.constant 0 : i32
    %c0_i32_1 = arith.constant 0 : i32
    return %c0_i32, %c0_i32_0 : i32, i32
  }
  func.func @transform_3(%arg0: i32, %arg1: i32) -> (i32, i32) {
    %c0_i32 = arith.constant 0 : i32
    %c0_i32_0 = arith.constant 0 : i32
    return %c0_i32, %arg1 : i32, i32
  }
  func.func @transform_4(%arg0: i32, %arg1: i32) -> (i32, i32) {
    %c0_i32 = arith.constant 0 : i32
    %c0_i32_0 = arith.constant 0 : i32
    return %c0_i32, %arg1 : i32, i32
  }
  func.func @transform_5(%arg0: i32, %arg1: i32) -> (i32, i32) {
    %c0_i32 = arith.constant 0 : i32
    return %arg0, %arg1 : i32, i32
  }
}

</mosaic_0001>

<llo_original>
// kernel: tpu_custom_call.1
$region0: #{tpu_custom_call.1}
  #allocation0 [shape = 'u32[]', space=smem, size = 0x4, offset = 0x4, fixed_abs, tag = 'smem constant byte address 0x4 - core index']
  #allocation1 [shape = 'u32[144,128]{1,0:T(1,128)}', space=vmem, size = 0x12000, scoped, tag = 'internal scratch']
  #allocation2 [shape = 'f32[8,128]{1,0:T(8,128)}', space=vmem, size = 0x1000, scoped, tag = 'scratch operand']
  %s0 = inlined_call_operand.hbm [shape: bf16[8,32], index: 0, kind: input, shape index: {}]
  %s1 = inlined_call_operand.hbm [shape: bf16[32,128], index: 1, kind: input, shape index: {}]
  %s2 = inlined_call_operand.vmem [shape: f32[1,128], index: 2, kind: input, shape index: {}]
  %s3 = inlined_call_operand.hbm [shape: bf16[128,128], index: 3, kind: input, shape index: {}]
  %s4 = inlined_call_operand.vmem [shape: f32[1,128], index: 4, kind: input, shape index: {}]
  %s5 = inlined_call_operand.hbm [shape: f32[8,128], index: 5, kind: output, shape index: {}]
  %s6 = sld [smem:[#allocation0]]
  $region46: #{tpu_custom_call.1} parent=0
    _
  %s8 = ssub.s32 1, %s6
  %s9 = scalar_select 0, %s8, %s6
  $region1: #{tpu_custom_call.1} parent=0
    #allocation3 [shape = 'u8[2048]{0}', space=vmem, size = 0x800, scoped, tag = 'input window, operand 0, single buffered']
    #allocation4 [shape = 's32[1]{0}', space=sflag, size = 0x4, scoped, tag = 'scoped memory for tpu_custom_call.1']
    #allocation5 [shape = 's32[1]{0}', space=sflag, size = 0x4, scoped, tag = 'scoped memory for tpu_custom_call.1']
    #allocation6 [shape = 'u8[8192]{0}', space=vmem, size = 0x2000, scoped, tag = 'input window, operand 1, single buffered']
    #allocation7 [shape = 's32[1]{0}', space=sflag, size = 0x4, scoped, tag = 'scoped memory for tpu_custom_call.1']
    #allocation8 [shape = 'u8[32768]{0}', space=vmem, size = 0x8000, scoped, tag = 'input window, operand 3, single buffered']
    #allocation9 [shape = 'u8[4096]{0}', space=vmem, size = 0x1000, scoped, tag = 'output window, operand 0, single buffered']
    %10 = vsyncpa [#allocation4], 0
    %11 = vsyncpa [#allocation7], 0
    %12 = vsyncpa [#allocation5], 0
    // Predicated region
    $region2: #{tpu_custom_call.1} parent=1 // pred_check
      _
    $region3: #{tpu_custom_call.1} parent=1 // pred_check_branch
      %14 = sbr.rel (0) target = $region5
    $region4: #{tpu_custom_call.1} parent=1 // pred_region
      %s16 = ssub.s32 64, 64
      %17 = vsyncadd [#allocation4], %s16
      %s19 = sshll.u32 [#allocation3], 4
      %s20 = int_to_ptr.vmem [resolvable:$true] %s19
      %22 = dma.hbm_to_vmem [thread:$0]  %s0, 64, %s20, [#allocation4]
    $region5: #{tpu_custom_call.1} parent=1 // pred_fallthru
      _
    // Predicated region
    $region6: #{tpu_custom_call.1} parent=1 // pred_check
      _
    $region7: #{tpu_custom_call.1} parent=1 // pred_check_branch
      %24 = sbr.rel (0) target = $region9
    $region8: #{tpu_custom_call.1} parent=1 // pred_region
      %s26 = ssub.s32 256, 256
      %27 = vsyncadd [#allocation7], %s26
      %s28 = sshll.u32 [#allocation6], 4
      %s29 = int_to_ptr.vmem [resolvable:$true] %s28
      %34 = dma.hbm_to_vmem [thread:$0]  %s1, 256, %s29, [#allocation7], 64, 64, 4
    $region9: #{tpu_custom_call.1} parent=1 // pred_fallthru
      _
    // Predicated region
    $region10: #{tpu_custom_call.1} parent=1 // pred_check
      _
    $region11: #{tpu_custom_call.1} parent=1 // pred_check_branch
      %36 = sbr.rel (0) target = $region13
    $region12: #{tpu_custom_call.1} parent=1 // pred_region
      _
    $region13: #{tpu_custom_call.1} parent=1 // pred_fallthru
      _
    // Predicated region
    $region14: #{tpu_custom_call.1} parent=1 // pred_check
      _
    $region15: #{tpu_custom_call.1} parent=1 // pred_check_branch
      %38 = sbr.rel (0) target = $region17
    $region16: #{tpu_custom_call.1} parent=1 // pred_region
      %s40 = ssub.s32 1024, 1024
      %41 = vsyncadd [#allocation7], %s40
      %s42 = sshll.u32 [#allocation8], 4
      %s43 = int_to_ptr.vmem [resolvable:$true] %s42
      %48 = dma.hbm_to_vmem [thread:$0]  %s3, 1024, %s43, [#allocation7], 64, 64, 4
    $region17: #{tpu_custom_call.1} parent=1 // pred_fallthru
      _
    // Predicated region
    $region18: #{tpu_custom_call.1} parent=1 // pred_check
      _
    $region19: #{tpu_custom_call.1} parent=1 // pred_check_branch
      %50 = sbr.rel (0) target = $region21
    $region20: #{tpu_custom_call.1} parent=1 // pred_region
      _
    $region21: #{tpu_custom_call.1} parent=1 // pred_fallthru
      _
    // Predicated region
    $region22: #{tpu_custom_call.1} parent=1 // pred_check
      _
    $region23: #{tpu_custom_call.1} parent=1 // pred_check_branch
      %52 = sbr.rel (0) target = $region25
    $region24: #{tpu_custom_call.1} parent=1 // pred_region
      %53 = dma.done [#allocation4], 64
    $region25: #{tpu_custom_call.1} parent=1 // pred_fallthru
      _
    // Predicated region
    $region26: #{tpu_custom_call.1} parent=1 // pred_check
      _
    $region27: #{tpu_custom_call.1} parent=1 // pred_check_branch
      %55 = sbr.rel (0) target = $region29
    $region28: #{tpu_custom_call.1} parent=1 // pred_region
      %56 = dma.done [#allocation7], 256
    $region29: #{tpu_custom_call.1} parent=1 // pred_fallthru
      _
    // Predicated region
    $region30: #{tpu_custom_call.1} parent=1 // pred_check
      _
    $region31: #{tpu_custom_call.1} parent=1 // pred_check_branch
      %58 = sbr.rel (0) target = $region33
    $region32: #{tpu_custom_call.1} parent=1 // pred_region
      %59 = dma.done [#allocation7], 1024
    $region33: #{tpu_custom_call.1} parent=1 // pred_fallthru
      _
    %p61 = scmp.eq.s32.totalorder 0, 0
    // Predicated region
    $region34: #{tpu_custom_call.1} parent=1 // pred_check
      %p62 = pneg %p61
    $region35: #{tpu_custom_call.1} parent=1 // pred_check_branch
      %64 = sbr.rel (%p62) target = $region37
    $region36: #{tpu_custom_call.1} parent=1 // pred_region
      %v65 = vld [vmem:[#allocation3] sm:$0xf]
      %v66 = vld [vmem:[#allocation6] sm:$0xf]
      %v67 = vld [vmem:[#allocation6 + $0x4] sm:$0xf]
      %v68 = vld [vmem:[#allocation6 + $0x8] sm:$0xf]
      %v69 = vld [vmem:[#allocation6 + $0xc] sm:$0xf]
      %v70 = vld [vmem:[%s2] sm:$0x1]
      %v72 = vlaneseq
      %v73 = vshrl.u32 %v72, 7
      %v74 = vsub.s32 0, %v73
      %v75 = vrot.slane %v70, %v74
      %v81 = vunpack.c.l.b16 %v66
      %v82 = vunpack.c.l.b16 %v67
      %v83 = vunpack.c.l.b16 %v68
      %v84 = vunpack.c.l.b16 %v69
      %v85 = vpack.c.b16 %v82, %v81
      %v86 = vpack.c.b16 %v84, %v83
      %vm89 = vcmask 261120
      %v91 = vsel %vm89, %v65, 0
      %93 = vmatprep.subr.bf16.mxu0 0
      %94 = vmatpush1.bf16.msra.mxu0 %v85
      %95 = vmatprep.subr.bf16.mxu0 0
      %96 = vmatpush1.bf16.msra.mxu0 %v86
      %97 = vmatprep.subr.bf16.mxu0 0
      %98 = vmatpush1.bf16.msra.mxu0 0
      %99 = vmatprep.subr.bf16.mxu0 0
      %100 = vmatpush1.bf16.msra.mxu0 0
      %101 = vmatprep.subr.bf16.mxu0 0
      %102 = vmatpush1.bf16.msra.mxu0 0
      %103 = vmatprep.subr.bf16.mxu0 0
      %104 = vmatpush1.bf16.msra.mxu0 0
      %105 = vmatprep.subr.bf16.mxu0 0
      %106 = vmatpush1.bf16.msra.mxu0 0
      %107 = vmatprep.subr.bf16.mxu0 0
      %108 = vmatpush1.bf16.msra.mxu0 0
      %109 = vmatprep.subr.bf16.mxu0 0
      %110 = vmatpush1.bf16.msra.mxu0 0
      %111 = vmatprep.subr.bf16.mxu0 0
      %112 = vmatpush1.bf16.msra.mxu0 0
      %113 = vmatprep.subr.bf16.mxu0 0
      %114 = vmatpush1.bf16.msra.mxu0 0
      %115 = vmatprep.subr.bf16.mxu0 0
      %116 = vmatpush1.bf16.msra.mxu0 0
      %117 = vmatprep.subr.bf16.mxu0 0
      %118 = vmatpush1.bf16.msra.mxu0 0
      %119 = vmatprep.subr.bf16.mxu0 0
      %120 = vmatpush1.bf16.msra.mxu0 0
      %121 = vmatprep.subr.bf16.mxu0 0
      %122 = vmatpush1.bf16.msra.mxu0 0
      %123 = vmatprep.subr.bf16.mxu0 0
      %124 = vmatpush1.bf16.msra.mxu0 0
      %125 = vmatprep.mubr.bf16.mxu0 0
      %126 = vmatmul.mubr.bf16.gmra.mrb[0].mxu0 %v91
      %v127 = vpop.f32.mrb[0].mxu0
      %v128 = vadd.f32 %v75, %v127
      %v129 = vpop.f32.mrb[0].mxu0
      %v130 = vpop.f32.mrb[0].mxu0
      %v131 = vpop.f32.mrb[0].mxu0
      %132 = vdwg.mxu0
      %v133 = vtanh.pop %v128
      %134 = vst [vmem:[#allocation2] sm:$0xff] %v133
    $region37: #{tpu_custom_call.1} parent=1 // pred_fallthru
      _
    %v135 = vld [vmem:[#allocation2] sm:$0xff]
    %v136 = vpack.c.bf16 %v135, %v135
    %v137 = vld [vmem:[#allocation8] sm:$0xf]
    %v138 = vld [vmem:[#allocation8 + $0x4] sm:$0xf]
    %v139 = vld [vmem:[#allocation8 + $0x8] sm:$0xf]
    %v140 = vld [vmem:[#allocation8 + $0xc] sm:$0xf]
    %v141 = vld [vmem:[#allocation8 + $0x10] sm:$0xf]
    %v142 = vld [vmem:[#allocation8 + $0x14] sm:$0xf]
    %v143 = vld [vmem:[#allocation8 + $0x18] sm:$0xf]
    %v144 = vld [vmem:[#allocation8 + $0x1c] sm:$0xf]
    %v145 = vld [vmem:[#allocation8 + $0x20] sm:$0xf]
    %v146 = vld [vmem:[#allocation8 + $0x24] sm:$0xf]
    %v147 = vld [vmem:[#allocation8 + $0x28] sm:$0xf]
    %v148 = vld [vmem:[#allocation8 + $0x2c] sm:$0xf]
    %v149 = vld [vmem:[#allocation8 + $0x30] sm:$0xf]
    %v150 = vld [vmem:[#allocation8 + $0x34] sm:$0xf]
    %v151 = vld [vmem:[#allocation8 + $0x38] sm:$0xf]
    %v152 = vld [vmem:[#allocation8 + $0x3c] sm:$0xf]
    %v153 = vld [vmem:[%s4] sm:$0x1]
    %v155 = vlaneseq
    %v156 = vshrl.u32 %v155, 7
    %v157 = vsub.s32 0, %v156
    %v158 = vrot.slane %v153, %v157
    %v176 = vunpack.c.l.b16 %v137
    %v177 = vunpack.c.l.b16 %v138
    %v178 = vunpack.c.l.b16 %v139
    %v179 = vunpack.c.l.b16 %v140
    %v180 = vunpack.c.l.b16 %v141
    %v181 = vunpack.c.l.b16 %v142
    %v182 = vunpack.c.l.b16 %v143
    %v183 = vunpack.c.l.b16 %v144
    %v184 = vunpack.c.l.b16 %v145
    %v185 = vunpack.c.l.b16 %v146
    %v186 = vunpack.c.l.b16 %v147
    %v187 = vunpack.c.l.b16 %v148
    %v188 = vunpack.c.l.b16 %v149
    %v189 = vunpack.c.l.b16 %v150
    %v190 = vunpack.c.l.b16 %v151
    %v191 = vunpack.c.l.b16 %v152
    %v192 = vpack.c.b16 %v177, %v176
    %v193 = vpack.c.b16 %v179, %v178
    %v194 = vpack.c.b16 %v181, %v180
    %v195 = vpack.c.b16 %v183, %v182
    %v196 = vpack.c.b16 %v185, %v184
    %v197 = vpack.c.b16 %v187, %v186
    %v198 = vpack.c.b16 %v189, %v188
    %v199 = vpack.c.b16 %v191, %v190
    %208 = vmatprep.subr.bf16.mxu0 0
    %209 = vmatpush1.bf16.msra.mxu0 %v192
    %210 = vmatprep.subr.bf16.mxu0 0
    %211 = vmatpush1.bf16.msra.mxu0 %v193
    %212 = vmatprep.subr.bf16.mxu0 0
    %213 = vmatpush1.bf16.msra.mxu0 %v194
    %214 = vmatprep.subr.bf16.mxu0 0
    %215 = vmatpush1.bf16.msra.mxu0 %v195
    %216 = vmatprep.subr.bf16.mxu0 0
    %217 = vmatpush1.bf16.msra.mxu0 %v196
    %218 = vmatprep.subr.bf16.mxu0 0
    %219 = vmatpush1.bf16.msra.mxu0 %v197
    %220 = vmatprep.subr.bf16.mxu0 0
    %221 = vmatpush1.bf16.msra.mxu0 %v198
    %222 = vmatprep.subr.bf16.mxu0 0
    %223 = vmatpush1.bf16.msra.mxu0 %v199
    %224 = vmatprep.subr.bf16.mxu0 0
    %225 = vmatpush1.bf16.msra.mxu0 0
    %226 = vmatprep.subr.bf16.mxu0 0
    %227 = vmatpush1.bf16.msra.mxu0 0
    %228 = vmatprep.subr.bf16.mxu0 0
    %229 = vmatpush1.bf16.msra.mxu0 0
    %230 = vmatprep.subr.bf16.mxu0 0
    %231 = vmatpush1.bf16.msra.mxu0 0
    %232 = vmatprep.subr.bf16.mxu0 0
    %233 = vmatpush1.bf16.msra.mxu0 0
    %234 = vmatprep.subr.bf16.mxu0 0
    %235 = vmatpush1.bf16.msra.mxu0 0
    %236 = vmatprep.subr.bf16.mxu0 0
    %237 = vmatpush1.bf16.msra.mxu0 0
    %238 = vmatprep.subr.bf16.mxu0 0
    %239 = vmatpush1.bf16.msra.mxu0 0
    %240 = vmatprep.mubr.bf16.mxu0 0
    %241 = vmatmul.mubr.bf16.gmra.mrb[0].mxu0 %v136
    %v242 = vpop.f32.mrb[0].mxu0
    %v243 = vadd.f32 %v158, %v242
    %v244 = vpop.f32.mrb[0].mxu0
    %v245 = vpop.f32.mrb[0].mxu0
    %v246 = vpop.f32.mrb[0].mxu0
    %247 = vdwg.mxu0
    %v248 = vtanh.pop %v243
    %249 = vst [vmem:[#allocation9] sm:$0xff] %v248
    // Predicated region
    $region38: #{tpu_custom_call.1} parent=1 // pred_check
      _
    $region39: #{tpu_custom_call.1} parent=1 // pred_check_branch
      %251 = sbr.rel (0) target = $region41
    $region40: #{tpu_custom_call.1} parent=1 // pred_region
      %s253 = ssub.s32 128, 128
      %254 = vsyncadd [#allocation5], %s253
      %s256 = sshll.u32 [#allocation9], 4
      %s257 = int_to_ptr.vmem [resolvable:$true] %s256
      %259 = dma.vmem_to_hbm [thread:$0]  %s257, 128, %s5, [#allocation5]
    $region41: #{tpu_custom_call.1} parent=1 // pred_fallthru
      _
    // Predicated region
    $region42: #{tpu_custom_call.1} parent=1 // pred_check
      _
    $region43: #{tpu_custom_call.1} parent=1 // pred_check_branch
      %261 = sbr.rel (0) target = $region45
    $region44: #{tpu_custom_call.1} parent=1 // pred_region
      %262 = dma.done [#allocation5], 128
    $region45: #{tpu_custom_call.1} parent=1 // pred_fallthru
      _
    %263 = vsyncpa [#allocation4], 1
    %264 = vsyncpa [#allocation7], 1
    %265 = vsyncpa [#allocation5], 1

</llo_original>
